<compile_context>
chip_gen: v7x
topology: tpu7x:2x2x1
jax: 0.10.0
libtpu: 0.0.40
codegen_flags: <defaults>
</compile_context>

<pallas_src>
import jax
import jax.numpy as jnp
from jax.experimental import pallas as pl
from jax.experimental.pallas import tpu as pltpu

HIDDEN = 256


def qnet_kernel(x_ref, w1_ref, b1_ref, w2_ref, b2_ref, wq_ref, bq_ref, o_ref):
    # Feature-major layout: x_ref is (d_in, tb) with the batch along lanes.
    x = x_ref[...].astype(jnp.bfloat16)

    # fc1 + relu: (HIDDEN, d_in) @ (d_in, tb) -> (HIDDEN, tb), f32 accumulation.
    h1 = jnp.dot(w1_ref[...], x, preferred_element_type=jnp.float32)
    h1 = jnp.maximum(h1 + b1_ref[...], 0.0)          # b1 (HIDDEN,1) lane-broadcast

    # fc2 + relu: (HIDDEN, HIDDEN) @ (HIDDEN, tb) -> (HIDDEN, tb).
    h2 = jnp.dot(w2_ref[...], h1.astype(jnp.bfloat16),
                 preferred_element_type=jnp.float32)
    h2 = jnp.maximum(h2 + b2_ref[...], 0.0)

    # q head: a 1-wide matmul would waste the MXU -> VPU multiply + sublane
    # reduce.  The result is already lane-major (1, tb): lane-dense store, no
    # relayout needed.
    q = jnp.sum(h2 * wq_ref[...], axis=0, keepdims=True) + bq_ref[...]
    o_ref[...] = q.astype(o_ref.dtype)
    # TODO(synk): SAC twin critics (Q1, Q2) could be fused by stacking extra
    # q-head rows here; the spec is a single Q output.


def _round_up(x, m):
    return ((x + m - 1) // m) * m


def qnetwork_forward(state, action, params, *, batch_tile=4096):
    """Pallas equivalent of QNetwork.forward(state, action) -> (B, 1)."""
    state = jnp.asarray(state, jnp.float32)      # preprocess(): to float32
    action = jnp.asarray(action, jnp.float32)
    B = state.shape[0]
    w1, b1, w2, b2, wq, bq = params
    d_in = state.shape[1] + action.shape[1]
    assert w1.shape == (HIDDEN, d_in), (w1.shape, d_in)

    # torch.cat([state, action], dim=1) fused with the feature-major transpose
    # (one XLA copy we need anyway to put the batch on the lane axis).
    xT = jnp.concatenate([state, action], axis=1).T          # (d_in, B)

    # Batch-tile selection:
    #  * B <= 256: one small block, rounded to 128 lanes (full-width vregs).
    #  * B  > 256: multiple of 256 (full-width MXU passes on v6e/v7x) sized so
    #    that there are >= 2 grid steps -> both v7x TensorCores get work.
    if B <= 256:
        tb = _round_up(max(B, 128), 128)
    else:
        bt = max(256, _round_up(batch_tile, 256))
        tb = min(bt, _round_up(pl.cdiv(B, 2), 256))
    n_blk = pl.cdiv(B, tb)
    bp = n_blk * tb
    if bp != B:
        # Padded columns are zeros; their (garbage) Q values are sliced off.
        xT = jnp.pad(xT, ((0, 0), (0, bp - B)))

    def resident(r, c):
        # Constant block index -> the block stays VMEM-resident across steps.
        return pl.BlockSpec((r, c), lambda i: (0, 0))

    out = pl.pallas_call(
        qnet_kernel,
        out_shape=jax.ShapeDtypeStruct((1, bp), jnp.float32),
        grid=(n_blk,),
        in_specs=[
            pl.BlockSpec((d_in, tb), lambda i: (0, i)),   # x^T tile (batch in lanes)
            resident(HIDDEN, d_in),                       # W1  (bf16)
            resident(HIDDEN, 1),                          # b1  (f32)
            resident(HIDDEN, HIDDEN),                     # W2  (bf16)
            resident(HIDDEN, 1),                          # b2  (f32)
            resident(HIDDEN, 1),                          # wq  (f32, VPU q head)
            resident(1, 1),                               # bq  (f32)
        ],
        out_specs=pl.BlockSpec((1, tb), lambda i: (0, i)),   # lane-dense q row
        compiler_params=pltpu.CompilerParams(
            dimension_semantics=("parallel",),               # megacore on v7x
            vmem_limit_bytes=32 * 1024 * 1024,               # raise v5e's 16 MiB
        ),
    )(xT, w1, b1, w2, b2, wq, bq)

    return out[0, :B][:, None]                               # (B, 1)


def init_params(key, state_space, action_space, hidden=HIDDEN):
    """Init mimicking torch nn.Linear default U(-1/sqrt(fan_in), +1/sqrt(fan_in)).

    Weights are stored in torch's (out_features, in_features) layout, which is
    exactly the feature-major layout the kernel consumes.  Matmul weights are
    bf16 (f32 MXU accumulation); biases and the 1-wide q head stay f32.
    """
    def linear(k, fan_in, fan_out):
        kw, kb = jax.random.split(k)
        bound = 1.0 / float(fan_in) ** 0.5
        w = jax.random.uniform(kw, (fan_out, fan_in), jnp.float32, -bound, bound)
        b = jax.random.uniform(kb, (fan_out, 1), jnp.float32, -bound, bound)
        return w, b

    k1, k2, k3 = jax.random.split(key, 3)
    w1, b1 = linear(k1, state_space + action_space, hidden)
    w2, b2 = linear(k2, hidden, hidden)
    wq, bq = linear(k3, hidden, 1)
    return (w1.astype(jnp.bfloat16), b1,
            w2.astype(jnp.bfloat16), b2,
            wq.T,                      # (hidden, 1) f32 -> VPU path, not MXU
            bq)                        # (1, 1) f32


def reference_forward(state, action, params):
    """Pure-JAX reference with the same bf16-in / f32-accumulate quantization.

    Note: bf16 weights/activations are a deliberate numeric change vs. an fp32
    torch QNetwork (errors up to ~1e-2 at unit scale), acceptable for an RL
    critic and covered by the test tolerance.
    """
    w1, b1, w2, b2, wq, bq = params
    xT = jnp.concatenate([jnp.asarray(state, jnp.float32),
                          jnp.asarray(action, jnp.float32)], axis=1).T
    h1 = jnp.maximum(jnp.dot(w1, xT.astype(jnp.bfloat16),
                             preferred_element_type=jnp.float32) + b1, 0.0)
    h2 = jnp.maximum(jnp.dot(w2, h1.astype(jnp.bfloat16),
                             preferred_element_type=jnp.float32) + b2, 0.0)
    q = jnp.sum(h2 * wq, axis=0, keepdims=True) + bq         # (1, B)
    return q.T                                               # (B, 1)


if __name__ == "__main__":
    key = jax.random.PRNGKey(0)
    k_s, k_a, k_p, k_s2, k_a2 = jax.random.split(key, 5)

    batch, state_space, action_space = 8, 16, 8
    state = jax.random.normal(k_s, (batch, state_space), jnp.float32)
    action = jax.random.normal(k_a, (batch, action_space), jnp.float32)
    params = init_params(k_p, state_space, action_space)

    q = jax.block_until_ready(qnetwork_forward(state, action, params))
    q_ref = reference_forward(state, action, params)
    assert q.shape == (batch, 1), q.shape
    assert jnp.allclose(q, q_ref, atol=2e-2, rtol=2e-2), \
        float(jnp.max(jnp.abs(q - q_ref)))

    # Exercise the multi-step grid: non-multiple batch, padding, >=2 grid steps.
    batch2 = 300
    state2 = jax.random.normal(k_s2, (batch2, state_space), jnp.float32)
    action2 = jax.random.normal(k_a2, (batch2, action_space), jnp.float32)
    q2 = jax.block_until_ready(qnetwork_forward(state2, action2, params))
    q2_ref = reference_forward(state2, action2, params)
    assert q2.shape == (batch2, 1), q2.shape
    assert jnp.allclose(q2, q2_ref, atol=2e-2, rtol=2e-2), \
        float(jnp.max(jnp.abs(q2 - q2_ref)))

    print("KERNEL_OK")
</pallas_src>

<mosaic_0001>
module attributes {stable_mosaic.version = 11 : i64} {
  func.func @qnet_kernel(%arg0: i32, %arg1: memref<24x128xf32, #tpu.memory_space<vmem>>, %arg2: memref<256x24xbf16, #tpu.memory_space<vmem>>, %arg3: memref<256x1xf32, #tpu.memory_space<vmem>>, %arg4: memref<256x256xbf16, #tpu.memory_space<vmem>>, %arg5: memref<256x1xf32, #tpu.memory_space<vmem>>, %arg6: memref<256x1xf32, #tpu.memory_space<vmem>>, %arg7: memref<1x1xf32, #tpu.memory_space<vmem>>, %arg8: memref<1x128xf32, #tpu.memory_space<vmem>>) attributes {dimension_semantics = [#tpu.dimension_semantics<parallel>], iteration_bounds = array<i64: 1>, scalar_prefetch = 0 : i64, scratch_operands = 0 : i64, tpu.core_type = #tpu.core_type<tc>, window_params = [{transform_indices = @transform_0, window_bounds = array<i64: 24, 128>}, {pipeline_mode = #tpu.pipeline_mode<synchronous>, transform_indices = @transform_1, window_bounds = array<i64: 256, 24>}, {pipeline_mode = #tpu.pipeline_mode<synchronous>, transform_indices = @transform_2, window_bounds = array<i64: 256, 1>}, {pipeline_mode = #tpu.pipeline_mode<synchronous>, transform_indices = @transform_3, window_bounds = array<i64: 256, 256>}, {pipeline_mode = #tpu.pipeline_mode<synchronous>, transform_indices = @transform_4, window_bounds = array<i64: 256, 1>}, {pipeline_mode = #tpu.pipeline_mode<synchronous>, transform_indices = @transform_5, window_bounds = array<i64: 256, 1>}, {pipeline_mode = #tpu.pipeline_mode<synchronous>, transform_indices = @transform_6, window_bounds = array<i64: 1, 1>}, {transform_indices = @transform_7, window_bounds = array<i64: 1, 128>}]} {
    %c0 = arith.constant 0 : index
    %c0_0 = arith.constant 0 : index
    %0 = vector.load %arg1[%c0, %c0_0] : memref<24x128xf32, #tpu.memory_space<vmem>>, vector<24x128xf32>
    %1 = arith.truncf %0 : vector<24x128xf32> to vector<24x128xbf16>
    %c0_1 = arith.constant 0 : index
    %c0_2 = arith.constant 0 : index
    %2 = vector.load %arg2[%c0_1, %c0_2] : memref<256x24xbf16, #tpu.memory_space<vmem>>, vector<256x24xbf16>
    %cst = arith.constant dense<0.000000e+00> : vector<256x128xf32>
    %3 = tpu.matmul %2, %1, %cst {dimension_numbers = #tpu.dot_dimension_numbers<[1], [0], [0], [1], [0, 0, 1, 1], [], []>} : vector<256x24xbf16>, vector<24x128xbf16>, vector<256x128xf32> -> vector<256x128xf32>
    %c0_3 = arith.constant 0 : index
    %c0_4 = arith.constant 0 : index
    %4 = vector.load %arg3[%c0_3, %c0_4] : memref<256x1xf32, #tpu.memory_space<vmem>>, vector<256x1xf32>
    %5 = vector.broadcast %4 : vector<256x1xf32> to vector<256x128xf32>
    %6 = arith.addf %3, %5 : vector<256x128xf32>
    %cst_5 = arith.constant 0.000000e+00 : f32
    %7 = vector.broadcast %cst_5 : f32 to vector<256x128xf32>
    %8 = arith.maximumf %6, %7 : vector<256x128xf32>
    %c0_6 = arith.constant 0 : index
    %c0_7 = arith.constant 0 : index
    %9 = vector.load %arg4[%c0_6, %c0_7] : memref<256x256xbf16, #tpu.memory_space<vmem>>, vector<256x256xbf16>
    %10 = arith.truncf %8 : vector<256x128xf32> to vector<256x128xbf16>
    %cst_8 = arith.constant dense<0.000000e+00> : vector<256x128xf32>
    %11 = tpu.matmul %9, %10, %cst_8 {dimension_numbers = #tpu.dot_dimension_numbers<[1], [0], [0], [1], [0, 0, 1, 1], [], []>} : vector<256x256xbf16>, vector<256x128xbf16>, vector<256x128xf32> -> vector<256x128xf32>
    %c0_9 = arith.constant 0 : index
    %c0_10 = arith.constant 0 : index
    %12 = vector.load %arg5[%c0_9, %c0_10] : memref<256x1xf32, #tpu.memory_space<vmem>>, vector<256x1xf32>
    %13 = vector.broadcast %12 : vector<256x1xf32> to vector<256x128xf32>
    %14 = arith.addf %11, %13 : vector<256x128xf32>
    %cst_11 = arith.constant 0.000000e+00 : f32
    %15 = vector.broadcast %cst_11 : f32 to vector<256x128xf32>
    %16 = arith.maximumf %14, %15 : vector<256x128xf32>
    %c0_12 = arith.constant 0 : index
    %c0_13 = arith.constant 0 : index
    %17 = vector.load %arg6[%c0_12, %c0_13] : memref<256x1xf32, #tpu.memory_space<vmem>>, vector<256x1xf32>
    %18 = vector.broadcast %17 : vector<256x1xf32> to vector<256x128xf32>
    %19 = arith.mulf %16, %18 : vector<256x128xf32>
    %cst_14 = arith.constant dense<0.000000e+00> : vector<128xf32>
    %20 = vector.multi_reduction <add>, %19, %cst_14 [0] : vector<256x128xf32> to vector<128xf32>
    %21 = vector.shape_cast %20 : vector<128xf32> to vector<1x128xf32>
    %c0_15 = arith.constant 0 : index
    %c0_16 = arith.constant 0 : index
    %22 = vector.load %arg7[%c0_15, %c0_16] : memref<1x1xf32, #tpu.memory_space<vmem>>, vector<1x1xf32>
    %23 = vector.broadcast %22 : vector<1x1xf32> to vector<1x128xf32>
    %24 = arith.addf %21, %23 : vector<1x128xf32>
    %c0_17 = arith.constant 0 : index
    %c0_18 = arith.constant 0 : index
    %25 = vector.load %arg8[%c0_17, %c0_18] : memref<1x128xf32, #tpu.memory_space<vmem>>, vector<1x128xf32>
    tpu.vector_store %arg8[%c0_17, %c0_18], %24 {strides = array<i32>} : memref<1x128xf32, #tpu.memory_space<vmem>>, vector<1x128xf32>,
    return
  }
  func.func @transform_0(%arg0: i32) -> (i32, i32) {
    %c0_i32 = arith.constant 0 : i32
    %c0_i32_0 = arith.constant 0 : i32
    return %c0_i32, %arg0 : i32, i32
  }
  func.func @transform_1(%arg0: i32) -> (i32, i32) {
    %c0_i32 = arith.constant 0 : i32
    %c0_i32_0 = arith.constant 0 : i32
    %c0_i32_1 = arith.constant 0 : i32
    return %c0_i32, %c0_i32_0 : i32, i32
  }
  func.func @transform_2(%arg0: i32) -> (i32, i32) {
    %c0_i32 = arith.constant 0 : i32
    %c0_i32_0 = arith.constant 0 : i32
    %c0_i32_1 = arith.constant 0 : i32
    return %c0_i32, %c0_i32_0 : i32, i32
  }
  func.func @transform_3(%arg0: i32) -> (i32, i32) {
    %c0_i32 = arith.constant 0 : i32
    %c0_i32_0 = arith.constant 0 : i32
    %c0_i32_1 = arith.constant 0 : i32
    return %c0_i32, %c0_i32_0 : i32, i32
  }
  func.func @transform_4(%arg0: i32) -> (i32, i32) {
    %c0_i32 = arith.constant 0 : i32
    %c0_i32_0 = arith.constant 0 : i32
    %c0_i32_1 = arith.constant 0 : i32
    return %c0_i32, %c0_i32_0 : i32, i32
  }
  func.func @transform_5(%arg0: i32) -> (i32, i32) {
    %c0_i32 = arith.constant 0 : i32
    %c0_i32_0 = arith.constant 0 : i32
    %c0_i32_1 = arith.constant 0 : i32
    return %c0_i32, %c0_i32_0 : i32, i32
  }
  func.func @transform_6(%arg0: i32) -> (i32, i32) {
    %c0_i32 = arith.constant 0 : i32
    %c0_i32_0 = arith.constant 0 : i32
    %c0_i32_1 = arith.constant 0 : i32
    return %c0_i32, %c0_i32_0 : i32, i32
  }
  func.func @transform_7(%arg0: i32) -> (i32, i32) {
    %c0_i32 = arith.constant 0 : i32
    %c0_i32_0 = arith.constant 0 : i32
    return %c0_i32, %arg0 : i32, i32
  }
}

</mosaic_0001>

<llo_original>
// kernel: tpu_custom_call.1
$region0: #{tpu_custom_call.1}
  #allocation0 [shape = 'u32[]', space=smem, size = 0x4, offset = 0x4, fixed_abs, tag = 'smem constant byte address 0x4 - core index']
  #allocation1 [shape = 'u32[144,128]{1,0:T(1,128)}', space=vmem, size = 0x12000, scoped, tag = 'internal scratch']
  #allocation2 [shape = 'f32[1,1]{1,0:T(1,128)S(1)}', space=vmem, size = 0x200, scoped, tag = 'scoped memory for tpu_custom_call.1']
  %s0 = inlined_call_operand.vmem [shape: f32[24,128], index: 0, kind: input, shape index: {}]
  %s1 = inlined_call_operand.vmem [shape: bf16[256,24], index: 1, kind: input, shape index: {}]
  %s2 = inlined_call_operand.vmem [shape: f32[256,1], index: 2, kind: input, shape index: {}]
  %s3 = inlined_call_operand.vmem [shape: bf16[256,256], index: 3, kind: input, shape index: {}]
  %s4 = inlined_call_operand.vmem [shape: f32[256,1], index: 4, kind: input, shape index: {}]
  %s5 = inlined_call_operand.vmem [shape: f32[256,1], index: 5, kind: input, shape index: {}]
  %s6 = inlined_call_operand.<no memory space> [shape: f32[1,1], index: 6, kind: input, shape index: {}]
  %s7 = inlined_call_operand.hbm [shape: f32[1,128], index: 7, kind: output, shape index: {}]
  %s8 = sld [smem:[#allocation0]]
  $region38: #{tpu_custom_call.1} parent=0
    _
  %s10 = ssub.s32 1, %s8
  %s11 = scalar_select 0, %s10, %s8
  %v12 = vstv %s6
  %13 = vst [vmem:[#allocation2] sm:$0x1] %v12
  $region1: #{tpu_custom_call.1} parent=0
    #allocation3 [shape = 'u8[512]{0}', space=vmem, size = 0x400, scoped, tag = 'output window, operand 0, single buffered']
    #allocation4 [shape = 's32[1]{0}', space=sflag, size = 0x4, scoped, tag = 'scoped memory for tpu_custom_call.1']
    %14 = vsyncpa [#allocation4], 0
    // Predicated region
    $region2: #{tpu_custom_call.1} parent=1 // pred_check
      _
    $region3: #{tpu_custom_call.1} parent=1 // pred_check_branch
      %16 = sbr.rel (0) target = $region5
    $region4: #{tpu_custom_call.1} parent=1 // pred_region
      _
    $region5: #{tpu_custom_call.1} parent=1 // pred_fallthru
      _
    // Predicated region
    $region6: #{tpu_custom_call.1} parent=1 // pred_check
      _
    $region7: #{tpu_custom_call.1} parent=1 // pred_check_branch
      %18 = sbr.rel (0) target = $region9
    $region8: #{tpu_custom_call.1} parent=1 // pred_region
      _
    $region9: #{tpu_custom_call.1} parent=1 // pred_fallthru
      _
    // Predicated region
    $region10: #{tpu_custom_call.1} parent=1 // pred_check
      _
    $region11: #{tpu_custom_call.1} parent=1 // pred_check_branch
      %20 = sbr.rel (0) target = $region13
    $region12: #{tpu_custom_call.1} parent=1 // pred_region
      _
    $region13: #{tpu_custom_call.1} parent=1 // pred_fallthru
      _
    // Predicated region
    $region14: #{tpu_custom_call.1} parent=1 // pred_check
      _
    $region15: #{tpu_custom_call.1} parent=1 // pred_check_branch
      %22 = sbr.rel (0) target = $region17
    $region16: #{tpu_custom_call.1} parent=1 // pred_region
      _
    $region17: #{tpu_custom_call.1} parent=1 // pred_fallthru
      _
    // Predicated region
    $region18: #{tpu_custom_call.1} parent=1 // pred_check
      _
    $region19: #{tpu_custom_call.1} parent=1 // pred_check_branch
      %24 = sbr.rel (0) target = $region21
    $region20: #{tpu_custom_call.1} parent=1 // pred_region
      _
    $region21: #{tpu_custom_call.1} parent=1 // pred_fallthru
      _
    // Predicated region
    $region22: #{tpu_custom_call.1} parent=1 // pred_check
      _
    $region23: #{tpu_custom_call.1} parent=1 // pred_check_branch
      %26 = sbr.rel (0) target = $region25
    $region24: #{tpu_custom_call.1} parent=1 // pred_region
      _
    $region25: #{tpu_custom_call.1} parent=1 // pred_fallthru
      _
    // Predicated region
    $region26: #{tpu_custom_call.1} parent=1 // pred_check
      _
    $region27: #{tpu_custom_call.1} parent=1 // pred_check_branch
      %28 = sbr.rel (0) target = $region29
    $region28: #{tpu_custom_call.1} parent=1 // pred_region
      _
    $region29: #{tpu_custom_call.1} parent=1 // pred_fallthru
      _
    %v30 = vld [vmem:[%s0] sm:$0xff]
    %v31 = vld [vmem:[%s0 + $0x8] sm:$0xff]
    %v32 = vld [vmem:[%s0 + $0x10] sm:$0xff]
    %v33 = vpack.c.bf16 %v31, %v30
    %v34 = vpack.c.bf16 %v32, %v32
    %v35 = vld [vmem:[%s1] sm:$0xf]
    %v36 = vld [vmem:[%s1 + $0x4] sm:$0xf]
    %v37 = vld [vmem:[%s1 + $0x8] sm:$0xf]
    %v38 = vld [vmem:[%s1 + $0xc] sm:$0xf]
    %v39 = vld [vmem:[%s1 + $0x10] sm:$0xf]
    %v40 = vld [vmem:[%s1 + $0x14] sm:$0xf]
    %v41 = vld [vmem:[%s1 + $0x18] sm:$0xf]
    %v42 = vld [vmem:[%s1 + $0x1c] sm:$0xf]
    %v43 = vld [vmem:[%s1 + $0x20] sm:$0xf]
    %v44 = vld [vmem:[%s1 + $0x24] sm:$0xf]
    %v45 = vld [vmem:[%s1 + $0x28] sm:$0xf]
    %v46 = vld [vmem:[%s1 + $0x2c] sm:$0xf]
    %v47 = vld [vmem:[%s1 + $0x30] sm:$0xf]
    %v48 = vld [vmem:[%s1 + $0x34] sm:$0xf]
    %v49 = vld [vmem:[%s1 + $0x38] sm:$0xf]
    %v50 = vld [vmem:[%s1 + $0x3c] sm:$0xf]
    %v51 = vld [vmem:[%s1 + $0x40] sm:$0xf]
    %v52 = vld [vmem:[%s1 + $0x44] sm:$0xf]
    %v53 = vld [vmem:[%s1 + $0x48] sm:$0xf]
    %v54 = vld [vmem:[%s1 + $0x4c] sm:$0xf]
    %v55 = vld [vmem:[%s1 + $0x50] sm:$0xf]
    %v56 = vld [vmem:[%s1 + $0x54] sm:$0xf]
    %v57 = vld [vmem:[%s1 + $0x58] sm:$0xf]
    %v58 = vld [vmem:[%s1 + $0x5c] sm:$0xf]
    %v59 = vld [vmem:[%s1 + $0x60] sm:$0xf]
    %v60 = vld [vmem:[%s1 + $0x64] sm:$0xf]
    %v61 = vld [vmem:[%s1 + $0x68] sm:$0xf]
    %v62 = vld [vmem:[%s1 + $0x6c] sm:$0xf]
    %v63 = vld [vmem:[%s1 + $0x70] sm:$0xf]
    %v64 = vld [vmem:[%s1 + $0x74] sm:$0xf]
    %v65 = vld [vmem:[%s1 + $0x78] sm:$0xf]
    %v66 = vld [vmem:[%s1 + $0x7c] sm:$0xf]
    %v67 = vld [vmem:[%s2] sm:$0xff]
    %v68 = vld [vmem:[%s2 + $0x8] sm:$0xff]
    %v69 = vld [vmem:[%s2 + $0x10] sm:$0xff]
    %v70 = vld [vmem:[%s2 + $0x18] sm:$0xff]
    %v71 = vld [vmem:[%s2 + $0x20] sm:$0xff]
    %v72 = vld [vmem:[%s2 + $0x28] sm:$0xff]
    %v73 = vld [vmem:[%s2 + $0x30] sm:$0xff]
    %v74 = vld [vmem:[%s2 + $0x38] sm:$0xff]
    %v75 = vld [vmem:[%s2 + $0x40] sm:$0xff]
    %v76 = vld [vmem:[%s2 + $0x48] sm:$0xff]
    %v77 = vld [vmem:[%s2 + $0x50] sm:$0xff]
    %v78 = vld [vmem:[%s2 + $0x58] sm:$0xff]
    %v79 = vld [vmem:[%s2 + $0x60] sm:$0xff]
    %v80 = vld [vmem:[%s2 + $0x68] sm:$0xff]
    %v81 = vld [vmem:[%s2 + $0x70] sm:$0xff]
    %v82 = vld [vmem:[%s2 + $0x78] sm:$0xff]
    %v83 = vld [vmem:[%s2 + $0x80] sm:$0xff]
    %v84 = vld [vmem:[%s2 + $0x88] sm:$0xff]
    %v85 = vld [vmem:[%s2 + $0x90] sm:$0xff]
    %v86 = vld [vmem:[%s2 + $0x98] sm:$0xff]
    %v87 = vld [vmem:[%s2 + $0xa0] sm:$0xff]
    %v88 = vld [vmem:[%s2 + $0xa8] sm:$0xff]
    %v89 = vld [vmem:[%s2 + $0xb0] sm:$0xff]
    %v90 = vld [vmem:[%s2 + $0xb8] sm:$0xff]
    %v91 = vld [vmem:[%s2 + $0xc0] sm:$0xff]
    %v92 = vld [vmem:[%s2 + $0xc8] sm:$0xff]
    %v93 = vld [vmem:[%s2 + $0xd0] sm:$0xff]
    %v94 = vld [vmem:[%s2 + $0xd8] sm:$0xff]
    %v95 = vld [vmem:[%s2 + $0xe0] sm:$0xff]
    %v96 = vld [vmem:[%s2 + $0xe8] sm:$0xff]
    %v97 = vld [vmem:[%s2 + $0xf0] sm:$0xff]
    %v98 = vld [vmem:[%s2 + $0xf8] sm:$0xff]
    %100 = vset.pattern.permute.xlu0 0
    %101 = vperm.xlu0 %100, %v67
    %v102 = vpop.permute.xlu0 %101
    %105 = vset.pattern.permute.xlu0 0
    %106 = vperm.xlu0 %105, %v68
    %v107 = vpop.permute.xlu0 %106
    %110 = vset.pattern.permute.xlu0 0
    %111 = vperm.xlu0 %110, %v69
    %v112 = vpop.permute.xlu0 %111
    %115 = vset.pattern.permute.xlu0 0
    %116 = vperm.xlu0 %115, %v70
    %v117 = vpop.permute.xlu0 %116
    %120 = vset.pattern.permute.xlu0 0
    %121 = vperm.xlu0 %120, %v71
    %v122 = vpop.permute.xlu0 %121
    %125 = vset.pattern.permute.xlu0 0
    %126 = vperm.xlu0 %125, %v72
    %v127 = vpop.permute.xlu0 %126
    %130 = vset.pattern.permute.xlu0 0
    %131 = vperm.xlu0 %130, %v73
    %v132 = vpop.permute.xlu0 %131
    %135 = vset.pattern.permute.xlu0 0
    %136 = vperm.xlu0 %135, %v74
    %v137 = vpop.permute.xlu0 %136
    %140 = vset.pattern.permute.xlu0 0
    %141 = vperm.xlu0 %140, %v75
    %v142 = vpop.permute.xlu0 %141
    %145 = vset.pattern.permute.xlu0 0
    %146 = vperm.xlu0 %145, %v76
    %v147 = vpop.permute.xlu0 %146
    %150 = vset.pattern.permute.xlu0 0
    %151 = vperm.xlu0 %150, %v77
    %v152 = vpop.permute.xlu0 %151
    %155 = vset.pattern.permute.xlu0 0
    %156 = vperm.xlu0 %155, %v78
    %v157 = vpop.permute.xlu0 %156
    %160 = vset.pattern.permute.xlu0 0
    %161 = vperm.xlu0 %160, %v79
    %v162 = vpop.permute.xlu0 %161
    %165 = vset.pattern.permute.xlu0 0
    %166 = vperm.xlu0 %165, %v80
    %v167 = vpop.permute.xlu0 %166
    %170 = vset.pattern.permute.xlu0 0
    %171 = vperm.xlu0 %170, %v81
    %v172 = vpop.permute.xlu0 %171
    %175 = vset.pattern.permute.xlu0 0
    %176 = vperm.xlu0 %175, %v82
    %v177 = vpop.permute.xlu0 %176
    %180 = vset.pattern.permute.xlu0 0
    %181 = vperm.xlu0 %180, %v83
    %v182 = vpop.permute.xlu0 %181
    %185 = vset.pattern.permute.xlu0 0
    %186 = vperm.xlu0 %185, %v84
    %v187 = vpop.permute.xlu0 %186
    %190 = vset.pattern.permute.xlu0 0
    %191 = vperm.xlu0 %190, %v85
    %v192 = vpop.permute.xlu0 %191
    %195 = vset.pattern.permute.xlu0 0
    %196 = vperm.xlu0 %195, %v86
    %v197 = vpop.permute.xlu0 %196
    %200 = vset.pattern.permute.xlu0 0
    %201 = vperm.xlu0 %200, %v87
    %v202 = vpop.permute.xlu0 %201
    %205 = vset.pattern.permute.xlu0 0
    %206 = vperm.xlu0 %205, %v88
    %v207 = vpop.permute.xlu0 %206
    %210 = vset.pattern.permute.xlu0 0
    %211 = vperm.xlu0 %210, %v89
    %v212 = vpop.permute.xlu0 %211
    %215 = vset.pattern.permute.xlu0 0
    %216 = vperm.xlu0 %215, %v90
    %v217 = vpop.permute.xlu0 %216
    %220 = vset.pattern.permute.xlu0 0
    %221 = vperm.xlu0 %220, %v91
    %v222 = vpop.permute.xlu0 %221
    %225 = vset.pattern.permute.xlu0 0
    %226 = vperm.xlu0 %225, %v92
    %v227 = vpop.permute.xlu0 %226
    %230 = vset.pattern.permute.xlu0 0
    %231 = vperm.xlu0 %230, %v93
    %v232 = vpop.permute.xlu0 %231
    %235 = vset.pattern.permute.xlu0 0
    %236 = vperm.xlu0 %235, %v94
    %v237 = vpop.permute.xlu0 %236
    %240 = vset.pattern.permute.xlu0 0
    %241 = vperm.xlu0 %240, %v95
    %v242 = vpop.permute.xlu0 %241
    %245 = vset.pattern.permute.xlu0 0
    %246 = vperm.xlu0 %245, %v96
    %v247 = vpop.permute.xlu0 %246
    %250 = vset.pattern.permute.xlu0 0
    %251 = vperm.xlu0 %250, %v97
    %v252 = vpop.permute.xlu0 %251
    %255 = vset.pattern.permute.xlu0 0
    %256 = vperm.xlu0 %255, %v98
    %v257 = vpop.permute.xlu0 %256
    %v291 = vunpack.c.l.b16 %v35
    %v292 = vunpack.c.l.b16 %v36
    %v293 = vunpack.c.l.b16 %v37
    %v294 = vunpack.c.l.b16 %v38
    %v295 = vunpack.c.l.b16 %v39
    %v296 = vunpack.c.l.b16 %v40
    %v297 = vunpack.c.l.b16 %v41
    %v298 = vunpack.c.l.b16 %v42
    %v299 = vunpack.c.l.b16 %v43
    %v300 = vunpack.c.l.b16 %v44
    %v301 = vunpack.c.l.b16 %v45
    %v302 = vunpack.c.l.b16 %v46
    %v303 = vunpack.c.l.b16 %v47
    %v304 = vunpack.c.l.b16 %v48
    %v305 = vunpack.c.l.b16 %v49
    %v306 = vunpack.c.l.b16 %v50
    %v307 = vunpack.c.l.b16 %v51
    %v308 = vunpack.c.l.b16 %v52
    %v309 = vunpack.c.l.b16 %v53
    %v310 = vunpack.c.l.b16 %v54
    %v311 = vunpack.c.l.b16 %v55
    %v312 = vunpack.c.l.b16 %v56
    %v313 = vunpack.c.l.b16 %v57
    %v314 = vunpack.c.l.b16 %v58
    %v315 = vunpack.c.l.b16 %v59
    %v316 = vunpack.c.l.b16 %v60
    %v317 = vunpack.c.l.b16 %v61
    %v318 = vunpack.c.l.b16 %v62
    %v319 = vunpack.c.l.b16 %v63
    %v320 = vunpack.c.l.b16 %v64
    %v321 = vunpack.c.l.b16 %v65
    %v322 = vunpack.c.l.b16 %v66
    %v323 = vpack.c.b16 %v292, %v291
    %v324 = vpack.c.b16 %v294, %v293
    %v325 = vpack.c.b16 %v296, %v295
    %v326 = vpack.c.b16 %v298, %v297
    %v327 = vpack.c.b16 %v300, %v299
    %v328 = vpack.c.b16 %v302, %v301
    %v329 = vpack.c.b16 %v304, %v303
    %v330 = vpack.c.b16 %v306, %v305
    %v331 = vpack.c.b16 %v308, %v307
    %v332 = vpack.c.b16 %v310, %v309
    %v333 = vpack.c.b16 %v312, %v311
    %v334 = vpack.c.b16 %v314, %v313
    %v335 = vpack.c.b16 %v316, %v315
    %v336 = vpack.c.b16 %v318, %v317
    %v337 = vpack.c.b16 %v320, %v319
    %v338 = vpack.c.b16 %v322, %v321
    %vm339 = vcmask 195584
    %v341 = vsel %vm339, %v323, 0
    %v344 = vsel %vm339, %v324, 0
    %v347 = vsel %vm339, %v325, 0
    %v350 = vsel %vm339, %v326, 0
    %v353 = vsel %vm339, %v327, 0
    %v356 = vsel %vm339, %v328, 0
    %v359 = vsel %vm339, %v329, 0
    %v362 = vsel %vm339, %v330, 0
    %v365 = vsel %vm339, %v331, 0
    %v368 = vsel %vm339, %v332, 0
    %v371 = vsel %vm339, %v333, 0
    %v374 = vsel %vm339, %v334, 0
    %v377 = vsel %vm339, %v335, 0
    %v380 = vsel %vm339, %v336, 0
    %v383 = vsel %vm339, %v337, 0
    %v386 = vsel %vm339, %v338, 0
    %vm388 = vcmask 1043456
    %v390 = vsel %vm388, %v34, 0
    %392 = vmatprep.subr.bf16.mxu0 0
    %393 = vmatpush1.bf16.msra.mxu0 %v33
    %394 = vmatprep.subr.bf16.mxu0 0
    %395 = vmatpush1.bf16.msra.mxu0 %v390
    %396 = vmatprep.subr.bf16.mxu0 0
    %397 = vmatpush1.bf16.msra.mxu0 0
    %398 = vmatprep.subr.bf16.mxu0 0
    %399 = vmatpush1.bf16.msra.mxu0 0
    %400 = vmatprep.subr.bf16.mxu0 0
    %401 = vmatpush1.bf16.msra.mxu0 0
    %402 = vmatprep.subr.bf16.mxu0 0
    %403 = vmatpush1.bf16.msra.mxu0 0
    %404 = vmatprep.subr.bf16.mxu0 0
    %405 = vmatpush1.bf16.msra.mxu0 0
    %406 = vmatprep.subr.bf16.mxu0 0
    %407 = vmatpush1.bf16.msra.mxu0 0
    %408 = vmatprep.subr.bf16.mxu0 0
    %409 = vmatpush1.bf16.msra.mxu0 0
    %410 = vmatprep.subr.bf16.mxu0 0
    %411 = vmatpush1.bf16.msra.mxu0 0
    %412 = vmatprep.subr.bf16.mxu0 0
    %413 = vmatpush1.bf16.msra.mxu0 0
    %414 = vmatprep.subr.bf16.mxu0 0
    %415 = vmatpush1.bf16.msra.mxu0 0
    %416 = vmatprep.subr.bf16.mxu0 0
    %417 = vmatpush1.bf16.msra.mxu0 0
    %418 = vmatprep.subr.bf16.mxu0 0
    %419 = vmatpush1.bf16.msra.mxu0 0
    %420 = vmatprep.subr.bf16.mxu0 0
    %421 = vmatpush1.bf16.msra.mxu0 0
    %422 = vmatprep.subr.bf16.mxu0 0
    %423 = vmatpush1.bf16.msra.mxu0 0
    %424 = vmatprep.mubr.bf16.mxu0 0
    %425 = vmatmul.mubr.bf16.gmra.mrb[0].mxu0 %v341
    %v426 = vpop.f32.mrb[0].mxu0
    %v427 = vadd.f32 %v102, %v426
    %v428 = vpop.f32.mrb[0].mxu0
    %v429 = vpop.f32.mrb[0].mxu0
    %v430 = vadd.f32 %v107, %v429
    %v431 = vpop.f32.mrb[0].mxu0
    %432 = vmatprep.mubr.bf16.mxu0 0
    %433 = vmatmul.mubr.bf16.gmra.mrb[0].mxu0 %v344
    %v434 = vpop.f32.mrb[0].mxu0
    %v435 = vadd.f32 %v112, %v434
    %v436 = vpop.f32.mrb[0].mxu0
    %v437 = vpop.f32.mrb[0].mxu0
    %v438 = vadd.f32 %v117, %v437
    %v439 = vpop.f32.mrb[0].mxu0
    %440 = vmatprep.mubr.bf16.mxu0 0
    %441 = vmatmul.mubr.bf16.gmra.mrb[0].mxu0 %v347
    %v442 = vpop.f32.mrb[0].mxu0
    %v443 = vadd.f32 %v122, %v442
    %v444 = vpop.f32.mrb[0].mxu0
    %v445 = vpop.f32.mrb[0].mxu0
    %v446 = vadd.f32 %v127, %v445
    %v447 = vpop.f32.mrb[0].mxu0
    %448 = vmatprep.mubr.bf16.mxu0 0
    %449 = vmatmul.mubr.bf16.gmra.mrb[0].mxu0 %v350
    %v450 = vpop.f32.mrb[0].mxu0
    %v451 = vadd.f32 %v132, %v450
    %v452 = vpop.f32.mrb[0].mxu0
    %v453 = vpop.f32.mrb[0].mxu0
    %v454 = vadd.f32 %v137, %v453
    %v455 = vpop.f32.mrb[0].mxu0
    %456 = vmatprep.mubr.bf16.mxu0 0
    %457 = vmatmul.mubr.bf16.gmra.mrb[0].mxu0 %v353
    %v458 = vpop.f32.mrb[0].mxu0
    %v459 = vadd.f32 %v142, %v458
    %v460 = vpop.f32.mrb[0].mxu0
    %v461 = vpop.f32.mrb[0].mxu0
    %v462 = vadd.f32 %v147, %v461
    %v463 = vpop.f32.mrb[0].mxu0
    %464 = vmatprep.mubr.bf16.mxu0 0
    %465 = vmatmul.mubr.bf16.gmra.mrb[0].mxu0 %v356
    %v466 = vpop.f32.mrb[0].mxu0
    %v467 = vadd.f32 %v152, %v466
    %v468 = vpop.f32.mrb[0].mxu0
    %v469 = vpop.f32.mrb[0].mxu0
    %v470 = vadd.f32 %v157, %v469
    %v471 = vpop.f32.mrb[0].mxu0
    %472 = vmatprep.mubr.bf16.mxu0 0
    %473 = vmatmul.mubr.bf16.gmra.mrb[0].mxu0 %v359
    %v474 = vpop.f32.mrb[0].mxu0
    %v475 = vadd.f32 %v162, %v474
    %v476 = vpop.f32.mrb[0].mxu0
    %v477 = vpop.f32.mrb[0].mxu0
    %v478 = vadd.f32 %v167, %v477
    %v479 = vpop.f32.mrb[0].mxu0
    %480 = vmatprep.mubr.bf16.mxu0 0
    %481 = vmatmul.mubr.bf16.gmra.mrb[0].mxu0 %v362
    %v482 = vpop.f32.mrb[0].mxu0
    %v483 = vadd.f32 %v172, %v482
    %v484 = vpop.f32.mrb[0].mxu0
    %v485 = vpop.f32.mrb[0].mxu0
    %v486 = vadd.f32 %v177, %v485
    %v487 = vpop.f32.mrb[0].mxu0
    %488 = vmatprep.mubr.bf16.mxu0 0
    %489 = vmatmul.mubr.bf16.gmra.mrb[0].mxu0 %v365
    %v490 = vpop.f32.mrb[0].mxu0
    %v491 = vadd.f32 %v182, %v490
    %v492 = vpop.f32.mrb[0].mxu0
    %v493 = vpop.f32.mrb[0].mxu0
    %v494 = vadd.f32 %v187, %v493
    %v495 = vpop.f32.mrb[0].mxu0
    %496 = vmatprep.mubr.bf16.mxu0 0
    %497 = vmatmul.mubr.bf16.gmra.mrb[0].mxu0 %v368
    %v498 = vpop.f32.mrb[0].mxu0
    %v499 = vadd.f32 %v192, %v498
    %v500 = vpop.f32.mrb[0].mxu0
    %v501 = vpop.f32.mrb[0].mxu0
    %v502 = vadd.f32 %v197, %v501
    %v503 = vpop.f32.mrb[0].mxu0
    %504 = vmatprep.mubr.bf16.mxu0 0
    %505 = vmatmul.mubr.bf16.gmra.mrb[0].mxu0 %v371
    %v506 = vpop.f32.mrb[0].mxu0
    %v507 = vadd.f32 %v202, %v506
    %v508 = vpop.f32.mrb[0].mxu0
    %v509 = vpop.f32.mrb[0].mxu0
    %v510 = vadd.f32 %v207, %v509
    %v511 = vpop.f32.mrb[0].mxu0
    %512 = vmatprep.mubr.bf16.mxu0 0
    %513 = vmatmul.mubr.bf16.gmra.mrb[0].mxu0 %v374
    %v514 = vpop.f32.mrb[0].mxu0
    %v515 = vadd.f32 %v212, %v514
    %v516 = vpop.f32.mrb[0].mxu0
    %v517 = vpop.f32.mrb[0].mxu0
    %v518 = vadd.f32 %v217, %v517
    %v519 = vpop.f32.mrb[0].mxu0
    %520 = vmatprep.mubr.bf16.mxu0 0
    %521 = vmatmul.mubr.bf16.gmra.mrb[0].mxu0 %v377
    %v522 = vpop.f32.mrb[0].mxu0
    %v523 = vadd.f32 %v222, %v522
    %v524 = vpop.f32.mrb[0].mxu0
    %v525 = vpop.f32.mrb[0].mxu0
    %v526 = vadd.f32 %v227, %v525
    %v527 = vpop.f32.mrb[0].mxu0
    %528 = vmatprep.mubr.bf16.mxu0 0
    %529 = vmatmul.mubr.bf16.gmra.mrb[0].mxu0 %v380
    %v530 = vpop.f32.mrb[0].mxu0
    %v531 = vadd.f32 %v232, %v530
    %v532 = vpop.f32.mrb[0].mxu0
    %v533 = vpop.f32.mrb[0].mxu0
    %v534 = vadd.f32 %v237, %v533
    %v535 = vpop.f32.mrb[0].mxu0
    %536 = vmatprep.mubr.bf16.mxu0 0
    %537 = vmatmul.mubr.bf16.gmra.mrb[0].mxu0 %v383
    %v538 = vpop.f32.mrb[0].mxu0
    %v539 = vadd.f32 %v242, %v538
    %v540 = vpop.f32.mrb[0].mxu0
    %v541 = vpop.f32.mrb[0].mxu0
    %v542 = vadd.f32 %v247, %v541
    %v543 = vpop.f32.mrb[0].mxu0
    %544 = vmatprep.mubr.bf16.mxu0 0
    %545 = vmatmul.mubr.bf16.gmra.mrb[0].mxu0 %v386
    %v546 = vpop.f32.mrb[0].mxu0
    %v547 = vadd.f32 %v252, %v546
    %v548 = vpop.f32.mrb[0].mxu0
    %v549 = vpop.f32.mrb[0].mxu0
    %v550 = vadd.f32 %v257, %v549
    %v551 = vpop.f32.mrb[0].mxu0
    %552 = vdwg.mxu0
    %v553 = vmax.f32 %v427, 0.0
    %v554 = vmax.f32 %v430, 0.0
    %v555 = vmax.f32 %v435, 0.0
    %v556 = vmax.f32 %v438, 0.0
    %v557 = vmax.f32 %v443, 0.0
    %v558 = vmax.f32 %v446, 0.0
    %v559 = vmax.f32 %v451, 0.0
    %v560 = vmax.f32 %v454, 0.0
    %v561 = vmax.f32 %v459, 0.0
    %v562 = vmax.f32 %v462, 0.0
    %v563 = vmax.f32 %v467, 0.0
    %v564 = vmax.f32 %v470, 0.0
    %v565 = vmax.f32 %v475, 0.0
    %v566 = vmax.f32 %v478, 0.0
    %v567 = vmax.f32 %v483, 0.0
    %v568 = vmax.f32 %v486, 0.0
    %v569 = vmax.f32 %v491, 0.0
    %v570 = vmax.f32 %v494, 0.0
    %v571 = vmax.f32 %v499, 0.0
    %v572 = vmax.f32 %v502, 0.0
    %v573 = vmax.f32 %v507, 0.0
    %v574 = vmax.f32 %v510, 0.0
    %v575 = vmax.f32 %v515, 0.0
    %v576 = vmax.f32 %v518, 0.0
    %v577 = vmax.f32 %v523, 0.0
    %v578 = vmax.f32 %v526, 0.0
    %v579 = vmax.f32 %v531, 0.0
    %v580 = vmax.f32 %v534, 0.0
    %v581 = vmax.f32 %v539, 0.0
    %v582 = vmax.f32 %v542, 0.0
    %v583 = vmax.f32 %v547, 0.0
    %v584 = vmax.f32 %v550, 0.0
    %v585 = vld [vmem:[%s3] sm:$0xff]
    %v586 = vld [vmem:[%s3 + $0x8] sm:$0xff]
    %v587 = vld [vmem:[%s3 + $0x10] sm:$0xff]
    %v588 = vld [vmem:[%s3 + $0x18] sm:$0xff]
    %v589 = vld [vmem:[%s3 + $0x20] sm:$0xff]
    %v590 = vld [vmem:[%s3 + $0x28] sm:$0xff]
    %v591 = vld [vmem:[%s3 + $0x30] sm:$0xff]
    %v592 = vld [vmem:[%s3 + $0x38] sm:$0xff]
    %v593 = vld [vmem:[%s3 + $0x40] sm:$0xff]
    %v594 = vld [vmem:[%s3 + $0x48] sm:$0xff]
    %v595 = vld [vmem:[%s3 + $0x50] sm:$0xff]
    %v596 = vld [vmem:[%s3 + $0x58] sm:$0xff]
    %v597 = vld [vmem:[%s3 + $0x60] sm:$0xff]
    %v598 = vld [vmem:[%s3 + $0x68] sm:$0xff]
    %v599 = vld [vmem:[%s3 + $0x70] sm:$0xff]
    %v600 = vld [vmem:[%s3 + $0x78] sm:$0xff]
    %v601 = vld [vmem:[%s3 + $0x80] sm:$0xff]
    %v602 = vld [vmem:[%s3 + $0x88] sm:$0xff]
    %v603 = vld [vmem:[%s3 + $0x90] sm:$0xff]
    %v604 = vld [vmem:[%s3 + $0x98] sm:$0xff]
    %v605 = vld [vmem:[%s3 + $0xa0] sm:$0xff]
    %v606 = vld [vmem:[%s3 + $0xa8] sm:$0xff]
    %v607 = vld [vmem:[%s3 + $0xb0] sm:$0xff]
    %v608 = vld [vmem:[%s3 + $0xb8] sm:$0xff]
    %v609 = vld [vmem:[%s3 + $0xc0] sm:$0xff]
    %v610 = vld [vmem:[%s3 + $0xc8] sm:$0xff]
    %v611 = vld [vmem:[%s3 + $0xd0] sm:$0xff]
    %v612 = vld [vmem:[%s3 + $0xd8] sm:$0xff]
    %v613 = vld [vmem:[%s3 + $0xe0] sm:$0xff]
    %v614 = vld [vmem:[%s3 + $0xe8] sm:$0xff]
    %v615 = vld [vmem:[%s3 + $0xf0] sm:$0xff]
    %v616 = vld [vmem:[%s3 + $0xf8] sm:$0xff]
    %v617 = vpack.c.bf16 %v554, %v553
    %v618 = vpack.c.bf16 %v556, %v555
    %v619 = vpack.c.bf16 %v558, %v557
    %v620 = vpack.c.bf16 %v560, %v559
    %v621 = vpack.c.bf16 %v562, %v561
    %v622 = vpack.c.bf16 %v564, %v563
    %v623 = vpack.c.bf16 %v566, %v565
    %v624 = vpack.c.bf16 %v568, %v567
    %v625 = vpack.c.bf16 %v570, %v569
    %v626 = vpack.c.bf16 %v572, %v571
    %v627 = vpack.c.bf16 %v574, %v573
    %v628 = vpack.c.bf16 %v576, %v575
    %v629 = vpack.c.bf16 %v578, %v577
    %v630 = vpack.c.bf16 %v580, %v579
    %v631 = vpack.c.bf16 %v582, %v581
    %v632 = vpack.c.bf16 %v584, %v583
    %v633 = vld [vmem:[%s4] sm:$0xff]
    %v634 = vld [vmem:[%s4 + $0x8] sm:$0xff]
    %v635 = vld [vmem:[%s4 + $0x10] sm:$0xff]
    %v636 = vld [vmem:[%s4 + $0x18] sm:$0xff]
    %v637 = vld [vmem:[%s4 + $0x20] sm:$0xff]
    %v638 = vld [vmem:[%s4 + $0x28] sm:$0xff]
    %v639 = vld [vmem:[%s4 + $0x30] sm:$0xff]
    %v640 = vld [vmem:[%s4 + $0x38] sm:$0xff]
    %v641 = vld [vmem:[%s4 + $0x40] sm:$0xff]
    %v642 = vld [vmem:[%s4 + $0x48] sm:$0xff]
    %v643 = vld [vmem:[%s4 + $0x50] sm:$0xff]
    %v644 = vld [vmem:[%s4 + $0x58] sm:$0xff]
    %v645 = vld [vmem:[%s4 + $0x60] sm:$0xff]
    %v646 = vld [vmem:[%s4 + $0x68] sm:$0xff]
    %v647 = vld [vmem:[%s4 + $0x70] sm:$0xff]
    %v648 = vld [vmem:[%s4 + $0x78] sm:$0xff]
    %v649 = vld [vmem:[%s4 + $0x80] sm:$0xff]
    %v650 = vld [vmem:[%s4 + $0x88] sm:$0xff]
    %v651 = vld [vmem:[%s4 + $0x90] sm:$0xff]
    %v652 = vld [vmem:[%s4 + $0x98] sm:$0xff]
    %v653 = vld [vmem:[%s4 + $0xa0] sm:$0xff]
    %v654 = vld [vmem:[%s4 + $0xa8] sm:$0xff]
    %v655 = vld [vmem:[%s4 + $0xb0] sm:$0xff]
    %v656 = vld [vmem:[%s4 + $0xb8] sm:$0xff]
    %v657 = vld [vmem:[%s4 + $0xc0] sm:$0xff]
    %v658 = vld [vmem:[%s4 + $0xc8] sm:$0xff]
    %v659 = vld [vmem:[%s4 + $0xd0] sm:$0xff]
    %v660 = vld [vmem:[%s4 + $0xd8] sm:$0xff]
    %v661 = vld [vmem:[%s4 + $0xe0] sm:$0xff]
    %v662 = vld [vmem:[%s4 + $0xe8] sm:$0xff]
    %v663 = vld [vmem:[%s4 + $0xf0] sm:$0xff]
    %v664 = vld [vmem:[%s4 + $0xf8] sm:$0xff]
    %666 = vset.pattern.permute.xlu0 0
    %667 = vperm.xlu0 %666, %v633
    %v668 = vpop.permute.xlu0 %667
    %671 = vset.pattern.permute.xlu0 0
    %672 = vperm.xlu0 %671, %v634
    %v673 = vpop.permute.xlu0 %672
    %676 = vset.pattern.permute.xlu0 0
    %677 = vperm.xlu0 %676, %v635
    %v678 = vpop.permute.xlu0 %677
    %681 = vset.pattern.permute.xlu0 0
    %682 = vperm.xlu0 %681, %v636
    %v683 = vpop.permute.xlu0 %682
    %686 = vset.pattern.permute.xlu0 0
    %687 = vperm.xlu0 %686, %v637
    %v688 = vpop.permute.xlu0 %687
    %691 = vset.pattern.permute.xlu0 0
    %692 = vperm.xlu0 %691, %v638
    %v693 = vpop.permute.xlu0 %692
    %696 = vset.pattern.permute.xlu0 0
    %697 = vperm.xlu0 %696, %v639
    %v698 = vpop.permute.xlu0 %697
    %701 = vset.pattern.permute.xlu0 0
    %702 = vperm.xlu0 %701, %v640
    %v703 = vpop.permute.xlu0 %702
    %706 = vset.pattern.permute.xlu0 0
    %707 = vperm.xlu0 %706, %v641
    %v708 = vpop.permute.xlu0 %707
    %711 = vset.pattern.permute.xlu0 0
    %712 = vperm.xlu0 %711, %v642
    %v713 = vpop.permute.xlu0 %712
    %716 = vset.pattern.permute.xlu0 0
    %717 = vperm.xlu0 %716, %v643
    %v718 = vpop.permute.xlu0 %717
    %721 = vset.pattern.permute.xlu0 0
    %722 = vperm.xlu0 %721, %v644
    %v723 = vpop.permute.xlu0 %722
    %726 = vset.pattern.permute.xlu0 0
    %727 = vperm.xlu0 %726, %v645
    %v728 = vpop.permute.xlu0 %727
    %731 = vset.pattern.permute.xlu0 0
    %732 = vperm.xlu0 %731, %v646
    %v733 = vpop.permute.xlu0 %732
    %736 = vset.pattern.permute.xlu0 0
    %737 = vperm.xlu0 %736, %v647
    %v738 = vpop.permute.xlu0 %737
    %741 = vset.pattern.permute.xlu0 0
    %742 = vperm.xlu0 %741, %v648
    %v743 = vpop.permute.xlu0 %742
    %746 = vset.pattern.permute.xlu0 0
    %747 = vperm.xlu0 %746, %v649
    %v748 = vpop.permute.xlu0 %747
    %751 = vset.pattern.permute.xlu0 0
    %752 = vperm.xlu0 %751, %v650
    %v753 = vpop.permute.xlu0 %752
    %756 = vset.pattern.permute.xlu0 0
    %757 = vperm.xlu0 %756, %v651
    %v758 = vpop.permute.xlu0 %757
    %761 = vset.pattern.permute.xlu0 0
    %762 = vperm.xlu0 %761, %v652
    %v763 = vpop.permute.xlu0 %762
    %766 = vset.pattern.permute.xlu0 0
    %767 = vperm.xlu0 %766, %v653
    %v768 = vpop.permute.xlu0 %767
    %771 = vset.pattern.permute.xlu0 0
    %772 = vperm.xlu0 %771, %v654
    %v773 = vpop.permute.xlu0 %772
    %776 = vset.pattern.permute.xlu0 0
    %777 = vperm.xlu0 %776, %v655
    %v778 = vpop.permute.xlu0 %777
    %781 = vset.pattern.permute.xlu0 0
    %782 = vperm.xlu0 %781, %v656
    %v783 = vpop.permute.xlu0 %782
    %786 = vset.pattern.permute.xlu0 0
    %787 = vperm.xlu0 %786, %v657
    %v788 = vpop.permute.xlu0 %787
    %791 = vset.pattern.permute.xlu0 0
    %792 = vperm.xlu0 %791, %v658
    %v793 = vpop.permute.xlu0 %792
    %796 = vset.pattern.permute.xlu0 0
    %797 = vperm.xlu0 %796, %v659
    %v798 = vpop.permute.xlu0 %797
    %801 = vset.pattern.permute.xlu0 0
    %802 = vperm.xlu0 %801, %v660
    %v803 = vpop.permute.xlu0 %802
    %806 = vset.pattern.permute.xlu0 0
    %807 = vperm.xlu0 %806, %v661
    %v808 = vpop.permute.xlu0 %807
    %811 = vset.pattern.permute.xlu0 0
    %812 = vperm.xlu0 %811, %v662
    %v813 = vpop.permute.xlu0 %812
    %816 = vset.pattern.permute.xlu0 0
    %817 = vperm.xlu0 %816, %v663
    %v818 = vpop.permute.xlu0 %817
    %821 = vset.pattern.permute.xlu0 0
    %822 = vperm.xlu0 %821, %v664
    %v823 = vpop.permute.xlu0 %822
    %v857 = vunpack.c.l.b16 %v585
    %v858 = vunpack.c.h.b16 %v585
    %v859 = vunpack.c.l.b16 %v586
    %v860 = vunpack.c.h.b16 %v586
    %v861 = vunpack.c.l.b16 %v587
    %v862 = vunpack.c.h.b16 %v587
    %v863 = vunpack.c.l.b16 %v588
    %v864 = vunpack.c.h.b16 %v588
    %v865 = vunpack.c.l.b16 %v589
    %v866 = vunpack.c.h.b16 %v589
    %v867 = vunpack.c.l.b16 %v590
    %v868 = vunpack.c.h.b16 %v590
    %v869 = vunpack.c.l.b16 %v591
    %v870 = vunpack.c.h.b16 %v591
    %v871 = vunpack.c.l.b16 %v592
    %v872 = vunpack.c.h.b16 %v592
    %v873 = vunpack.c.l.b16 %v593
    %v874 = vunpack.c.h.b16 %v593
    %v875 = vunpack.c.l.b16 %v594
    %v876 = vunpack.c.h.b16 %v594
    %v877 = vunpack.c.l.b16 %v595
    %v878 = vunpack.c.h.b16 %v595
    %v879 = vunpack.c.l.b16 %v596
    %v880 = vunpack.c.h.b16 %v596
    %v881 = vunpack.c.l.b16 %v597
    %v882 = vunpack.c.h.b16 %v597
    %v883 = vunpack.c.l.b16 %v598
    %v884 = vunpack.c.h.b16 %v598
    %v885 = vunpack.c.l.b16 %v599
    %v886 = vunpack.c.h.b16 %v599
    %v887 = vunpack.c.l.b16 %v600
    %v888 = vunpack.c.h.b16 %v600
    %v889 = vunpack.c.l.b16 %v601
    %v890 = vunpack.c.h.b16 %v601
    %v891 = vunpack.c.l.b16 %v602
    %v892 = vunpack.c.h.b16 %v602
    %v893 = vunpack.c.l.b16 %v603
    %v894 = vunpack.c.h.b16 %v603
    %v895 = vunpack.c.l.b16 %v604
    %v896 = vunpack.c.h.b16 %v604
    %v897 = vunpack.c.l.b16 %v605
    %v898 = vunpack.c.h.b16 %v605
    %v899 = vunpack.c.l.b16 %v606
    %v900 = vunpack.c.h.b16 %v606
    %v901 = vunpack.c.l.b16 %v607
    %v902 = vunpack.c.h.b16 %v607
    %v903 = vunpack.c.l.b16 %v608
    %v904 = vunpack.c.h.b16 %v608
    %v905 = vunpack.c.l.b16 %v609
    %v906 = vunpack.c.h.b16 %v609
    %v907 = vunpack.c.l.b16 %v610
    %v908 = vunpack.c.h.b16 %v610
    %v909 = vunpack.c.l.b16 %v611
    %v910 = vunpack.c.h.b16 %v611
    %v911 = vunpack.c.l.b16 %v612
    %v912 = vunpack.c.h.b16 %v612
    %v913 = vunpack.c.l.b16 %v613
    %v914 = vunpack.c.h.b16 %v613
    %v915 = vunpack.c.l.b16 %v614
    %v916 = vunpack.c.h.b16 %v614
    %v917 = vunpack.c.l.b16 %v615
    %v918 = vunpack.c.h.b16 %v615
    %v919 = vunpack.c.l.b16 %v616
    %v920 = vunpack.c.h.b16 %v616
    %v921 = vpack.c.b16 %v859, %v857
    %v922 = vpack.c.b16 %v860, %v858
    %v923 = vpack.c.b16 %v863, %v861
    %v924 = vpack.c.b16 %v864, %v862
    %v925 = vpack.c.b16 %v867, %v865
    %v926 = vpack.c.b16 %v868, %v866
    %v927 = vpack.c.b16 %v871, %v869
    %v928 = vpack.c.b16 %v872, %v870
    %v929 = vpack.c.b16 %v875, %v873
    %v930 = vpack.c.b16 %v876, %v874
    %v931 = vpack.c.b16 %v879, %v877
    %v932 = vpack.c.b16 %v880, %v878
    %v933 = vpack.c.b16 %v883, %v881
    %v934 = vpack.c.b16 %v884, %v882
    %v935 = vpack.c.b16 %v887, %v885
    %v936 = vpack.c.b16 %v888, %v886
    %v937 = vpack.c.b16 %v891, %v889
    %v938 = vpack.c.b16 %v892, %v890
    %v939 = vpack.c.b16 %v895, %v893
    %v940 = vpack.c.b16 %v896, %v894
    %v941 = vpack.c.b16 %v899, %v897
    %v942 = vpack.c.b16 %v900, %v898
    %v943 = vpack.c.b16 %v903, %v901
    %v944 = vpack.c.b16 %v904, %v902
    %v945 = vpack.c.b16 %v907, %v905
    %v946 = vpack.c.b16 %v908, %v906
    %v947 = vpack.c.b16 %v911, %v909
    %v948 = vpack.c.b16 %v912, %v910
    %v949 = vpack.c.b16 %v915, %v913
    %v950 = vpack.c.b16 %v916, %v914
    %v951 = vpack.c.b16 %v919, %v917
    %v952 = vpack.c.b16 %v920, %v918
    %985 = vmatprep.subr.bf16.mxu0 0
    %986 = vmatpush1.bf16.msra.mxu0 %v617
    %987 = vmatprep.subr.bf16.mxu0 0
    %988 = vmatpush1.bf16.msra.mxu0 %v618
    %989 = vmatprep.subr.bf16.mxu0 0
    %990 = vmatpush1.bf16.msra.mxu0 %v619
    %991 = vmatprep.subr.bf16.mxu0 0
    %992 = vmatpush1.bf16.msra.mxu0 %v620
    %993 = vmatprep.subr.bf16.mxu0 0
    %994 = vmatpush1.bf16.msra.mxu0 %v621
    %995 = vmatprep.subr.bf16.mxu0 0
    %996 = vmatpush1.bf16.msra.mxu0 %v622
    %997 = vmatprep.subr.bf16.mxu0 0
    %998 = vmatpush1.bf16.msra.mxu0 %v623
    %999 = vmatprep.subr.bf16.mxu0 0
    %1000 = vmatpush1.bf16.msra.mxu0 %v624
    %1001 = vmatprep.subr.bf16.mxu0 0
    %1002 = vmatpush1.bf16.msra.mxu0 %v625
    %1003 = vmatprep.subr.bf16.mxu0 0
    %1004 = vmatpush1.bf16.msra.mxu0 %v626
    %1005 = vmatprep.subr.bf16.mxu0 0
    %1006 = vmatpush1.bf16.msra.mxu0 %v627
    %1007 = vmatprep.subr.bf16.mxu0 0
    %1008 = vmatpush1.bf16.msra.mxu0 %v628
    %1009 = vmatprep.subr.bf16.mxu0 0
    %1010 = vmatpush1.bf16.msra.mxu0 %v629
    %1011 = vmatprep.subr.bf16.mxu0 0
    %1012 = vmatpush1.bf16.msra.mxu0 %v630
    %1013 = vmatprep.subr.bf16.mxu0 0
    %1014 = vmatpush1.bf16.msra.mxu0 %v631
    %1015 = vmatprep.subr.bf16.mxu0 0
    %1016 = vmatpush1.bf16.msra.mxu0 %v632
    %1017 = vmatprep.mubr.bf16.mxu0 %v922
    %1018 = vmatmul.mubr.bf16.gmra.mrb[0].mxu0 %v921
    %v1019 = vpop.f32.mrb[0].mxu0
    %v1020 = vadd.f32 %v668, %v1019
    %v1021 = vpop.f32.mrb[0].mxu0
    %v1022 = vpop.f32.mrb[0].mxu0
    %v1023 = vadd.f32 %v673, %v1022
    %v1024 = vpop.f32.mrb[0].mxu0
    %1025 = vmatprep.mubr.bf16.mxu0 %v924
    %1026 = vmatmul.mubr.bf16.gmra.mrb[0].mxu0 %v923
    %v1027 = vpop.f32.mrb[0].mxu0
    %v1028 = vadd.f32 %v678, %v1027
    %v1029 = vpop.f32.mrb[0].mxu0
    %v1030 = vpop.f32.mrb[0].mxu0
    %v1031 = vadd.f32 %v683, %v1030
    %v1032 = vpop.f32.mrb[0].mxu0
    %1033 = vmatprep.mubr.bf16.mxu0 %v926
    %1034 = vmatmul.mubr.bf16.gmra.mrb[0].mxu0 %v925
    %v1035 = vpop.f32.mrb[0].mxu0
    %v1036 = vadd.f32 %v688, %v1035
    %v1037 = vpop.f32.mrb[0].mxu0
    %v1038 = vpop.f32.mrb[0].mxu0
    %v1039 = vadd.f32 %v693, %v1038
    %v1040 = vpop.f32.mrb[0].mxu0
    %1041 = vmatprep.mubr.bf16.mxu0 %v928
    %1042 = vmatmul.mubr.bf16.gmra.mrb[0].mxu0 %v927
    %v1043 = vpop.f32.mrb[0].mxu0
    %v1044 = vadd.f32 %v698, %v1043
    %v1045 = vpop.f32.mrb[0].mxu0
    %v1046 = vpop.f32.mrb[0].mxu0
    %v1047 = vadd.f32 %v703, %v1046
    %v1048 = vpop.f32.mrb[0].mxu0
    %1049 = vmatprep.mubr.bf16.mxu0 %v930
    %1050 = vmatmul.mubr.bf16.gmra.mrb[0].mxu0 %v929
    %v1051 = vpop.f32.mrb[0].mxu0
    %v1052 = vadd.f32 %v708, %v1051
    %v1053 = vpop.f32.mrb[0].mxu0
    %v1054 = vpop.f32.mrb[0].mxu0
    %v1055 = vadd.f32 %v713, %v1054
    %v1056 = vpop.f32.mrb[0].mxu0
    %1057 = vmatprep.mubr.bf16.mxu0 %v932
    %1058 = vmatmul.mubr.bf16.gmra.mrb[0].mxu0 %v931
    %v1059 = vpop.f32.mrb[0].mxu0
    %v1060 = vadd.f32 %v718, %v1059
    %v1061 = vpop.f32.mrb[0].mxu0
    %v1062 = vpop.f32.mrb[0].mxu0
    %v1063 = vadd.f32 %v723, %v1062
    %v1064 = vpop.f32.mrb[0].mxu0
    %1065 = vmatprep.mubr.bf16.mxu0 %v934
    %1066 = vmatmul.mubr.bf16.gmra.mrb[0].mxu0 %v933
    %v1067 = vpop.f32.mrb[0].mxu0
    %v1068 = vadd.f32 %v728, %v1067
    %v1069 = vpop.f32.mrb[0].mxu0
    %v1070 = vpop.f32.mrb[0].mxu0
    %v1071 = vadd.f32 %v733, %v1070
    %v1072 = vpop.f32.mrb[0].mxu0
    %1073 = vmatprep.mubr.bf16.mxu0 %v936
    %1074 = vmatmul.mubr.bf16.gmra.mrb[0].mxu0 %v935
    %v1075 = vpop.f32.mrb[0].mxu0
    %v1076 = vadd.f32 %v738, %v1075
    %v1077 = vpop.f32.mrb[0].mxu0
    %v1078 = vpop.f32.mrb[0].mxu0
    %v1079 = vadd.f32 %v743, %v1078
    %v1080 = vpop.f32.mrb[0].mxu0
    %1081 = vmatprep.mubr.bf16.mxu0 %v938
    %1082 = vmatmul.mubr.bf16.gmra.mrb[0].mxu0 %v937
    %v1083 = vpop.f32.mrb[0].mxu0
    %v1084 = vadd.f32 %v748, %v1083
    %v1085 = vpop.f32.mrb[0].mxu0
    %v1086 = vpop.f32.mrb[0].mxu0
    %v1087 = vadd.f32 %v753, %v1086
    %v1088 = vpop.f32.mrb[0].mxu0
    %1089 = vmatprep.mubr.bf16.mxu0 %v940
    %1090 = vmatmul.mubr.bf16.gmra.mrb[0].mxu0 %v939
    %v1091 = vpop.f32.mrb[0].mxu0
    %v1092 = vadd.f32 %v758, %v1091
    %v1093 = vpop.f32.mrb[0].mxu0
    %v1094 = vpop.f32.mrb[0].mxu0
    %v1095 = vadd.f32 %v763, %v1094
    %v1096 = vpop.f32.mrb[0].mxu0
    %1097 = vmatprep.mubr.bf16.mxu0 %v942
    %1098 = vmatmul.mubr.bf16.gmra.mrb[0].mxu0 %v941
    %v1099 = vpop.f32.mrb[0].mxu0
    %v1100 = vadd.f32 %v768, %v1099
    %v1101 = vpop.f32.mrb[0].mxu0
    %v1102 = vpop.f32.mrb[0].mxu0
    %v1103 = vadd.f32 %v773, %v1102
    %v1104 = vpop.f32.mrb[0].mxu0
    %1105 = vmatprep.mubr.bf16.mxu0 %v944
    %1106 = vmatmul.mubr.bf16.gmra.mrb[0].mxu0 %v943
    %v1107 = vpop.f32.mrb[0].mxu0
    %v1108 = vadd.f32 %v778, %v1107
    %v1109 = vpop.f32.mrb[0].mxu0
    %v1110 = vpop.f32.mrb[0].mxu0
    %v1111 = vadd.f32 %v783, %v1110
    %v1112 = vpop.f32.mrb[0].mxu0
    %1113 = vmatprep.mubr.bf16.mxu0 %v946
    %1114 = vmatmul.mubr.bf16.gmra.mrb[0].mxu0 %v945
    %v1115 = vpop.f32.mrb[0].mxu0
    %v1116 = vadd.f32 %v788, %v1115
    %v1117 = vpop.f32.mrb[0].mxu0
    %v1118 = vpop.f32.mrb[0].mxu0
    %v1119 = vadd.f32 %v793, %v1118
    %v1120 = vpop.f32.mrb[0].mxu0
    %1121 = vmatprep.mubr.bf16.mxu0 %v948
    %1122 = vmatmul.mubr.bf16.gmra.mrb[0].mxu0 %v947
    %v1123 = vpop.f32.mrb[0].mxu0
    %v1124 = vadd.f32 %v798, %v1123
    %v1125 = vpop.f32.mrb[0].mxu0
    %v1126 = vpop.f32.mrb[0].mxu0
    %v1127 = vadd.f32 %v803, %v1126
    %v1128 = vpop.f32.mrb[0].mxu0
    %1129 = vmatprep.mubr.bf16.mxu0 %v950
    %1130 = vmatmul.mubr.bf16.gmra.mrb[0].mxu0 %v949
    %v1131 = vpop.f32.mrb[0].mxu0
    %v1132 = vadd.f32 %v808, %v1131
    %v1133 = vpop.f32.mrb[0].mxu0
    %v1134 = vpop.f32.mrb[0].mxu0
    %v1135 = vadd.f32 %v813, %v1134
    %v1136 = vpop.f32.mrb[0].mxu0
    %1137 = vmatprep.mubr.bf16.mxu0 %v952
    %1138 = vmatmul.mubr.bf16.gmra.mrb[0].mxu0 %v951
    %v1139 = vpop.f32.mrb[0].mxu0
    %v1140 = vadd.f32 %v818, %v1139
    %v1141 = vpop.f32.mrb[0].mxu0
    %v1142 = vpop.f32.mrb[0].mxu0
    %v1143 = vadd.f32 %v823, %v1142
    %v1144 = vpop.f32.mrb[0].mxu0
    %1145 = vdwg.mxu0
    %v1146 = vmax.f32 %v1020, 0.0
    %v1147 = vmax.f32 %v1023, 0.0
    %v1148 = vmax.f32 %v1028, 0.0
    %v1149 = vmax.f32 %v1031, 0.0
    %v1150 = vmax.f32 %v1036, 0.0
    %v1151 = vmax.f32 %v1039, 0.0
    %v1152 = vmax.f32 %v1044, 0.0
    %v1153 = vmax.f32 %v1047, 0.0
    %v1154 = vmax.f32 %v1052, 0.0
    %v1155 = vmax.f32 %v1055, 0.0
    %v1156 = vmax.f32 %v1060, 0.0
    %v1157 = vmax.f32 %v1063, 0.0
    %v1158 = vmax.f32 %v1068, 0.0
    %v1159 = vmax.f32 %v1071, 0.0
    %v1160 = vmax.f32 %v1076, 0.0
    %v1161 = vmax.f32 %v1079, 0.0
    %v1162 = vmax.f32 %v1084, 0.0
    %v1163 = vmax.f32 %v1087, 0.0
    %v1164 = vmax.f32 %v1092, 0.0
    %v1165 = vmax.f32 %v1095, 0.0
    %v1166 = vmax.f32 %v1100, 0.0
    %v1167 = vmax.f32 %v1103, 0.0
    %v1168 = vmax.f32 %v1108, 0.0
    %v1169 = vmax.f32 %v1111, 0.0
    %v1170 = vmax.f32 %v1116, 0.0
    %v1171 = vmax.f32 %v1119, 0.0
    %v1172 = vmax.f32 %v1124, 0.0
    %v1173 = vmax.f32 %v1127, 0.0
    %v1174 = vmax.f32 %v1132, 0.0
    %v1175 = vmax.f32 %v1135, 0.0
    %v1176 = vmax.f32 %v1140, 0.0
    %v1177 = vmax.f32 %v1143, 0.0
    %v1178 = vld [vmem:[%s5] sm:$0xff]
    %v1179 = vld [vmem:[%s5 + $0x8] sm:$0xff]
    %v1180 = vld [vmem:[%s5 + $0x10] sm:$0xff]
    %v1181 = vld [vmem:[%s5 + $0x18] sm:$0xff]
    %v1182 = vld [vmem:[%s5 + $0x20] sm:$0xff]
    %v1183 = vld [vmem:[%s5 + $0x28] sm:$0xff]
    %v1184 = vld [vmem:[%s5 + $0x30] sm:$0xff]
    %v1185 = vld [vmem:[%s5 + $0x38] sm:$0xff]
    %v1186 = vld [vmem:[%s5 + $0x40] sm:$0xff]
    %v1187 = vld [vmem:[%s5 + $0x48] sm:$0xff]
    %v1188 = vld [vmem:[%s5 + $0x50] sm:$0xff]
    %v1189 = vld [vmem:[%s5 + $0x58] sm:$0xff]
    %v1190 = vld [vmem:[%s5 + $0x60] sm:$0xff]
    %v1191 = vld [vmem:[%s5 + $0x68] sm:$0xff]
    %v1192 = vld [vmem:[%s5 + $0x70] sm:$0xff]
    %v1193 = vld [vmem:[%s5 + $0x78] sm:$0xff]
    %v1194 = vld [vmem:[%s5 + $0x80] sm:$0xff]
    %v1195 = vld [vmem:[%s5 + $0x88] sm:$0xff]
    %v1196 = vld [vmem:[%s5 + $0x90] sm:$0xff]
    %v1197 = vld [vmem:[%s5 + $0x98] sm:$0xff]
    %v1198 = vld [vmem:[%s5 + $0xa0] sm:$0xff]
    %v1199 = vld [vmem:[%s5 + $0xa8] sm:$0xff]
    %v1200 = vld [vmem:[%s5 + $0xb0] sm:$0xff]
    %v1201 = vld [vmem:[%s5 + $0xb8] sm:$0xff]
    %v1202 = vld [vmem:[%s5 + $0xc0] sm:$0xff]
    %v1203 = vld [vmem:[%s5 + $0xc8] sm:$0xff]
    %v1204 = vld [vmem:[%s5 + $0xd0] sm:$0xff]
    %v1205 = vld [vmem:[%s5 + $0xd8] sm:$0xff]
    %v1206 = vld [vmem:[%s5 + $0xe0] sm:$0xff]
    %v1207 = vld [vmem:[%s5 + $0xe8] sm:$0xff]
    %v1208 = vld [vmem:[%s5 + $0xf0] sm:$0xff]
    %v1209 = vld [vmem:[%s5 + $0xf8] sm:$0xff]
    %1211 = vset.pattern.permute.xlu0 0
    %1212 = vperm.xlu0 %1211, %v1178
    %v1213 = vpop.permute.xlu0 %1212
    %1216 = vset.pattern.permute.xlu0 0
    %1217 = vperm.xlu0 %1216, %v1179
    %v1218 = vpop.permute.xlu0 %1217
    %1221 = vset.pattern.permute.xlu0 0
    %1222 = vperm.xlu0 %1221, %v1180
    %v1223 = vpop.permute.xlu0 %1222
    %1226 = vset.pattern.permute.xlu0 0
    %1227 = vperm.xlu0 %1226, %v1181
    %v1228 = vpop.permute.xlu0 %1227
    %1231 = vset.pattern.permute.xlu0 0
    %1232 = vperm.xlu0 %1231, %v1182
    %v1233 = vpop.permute.xlu0 %1232
    %1236 = vset.pattern.permute.xlu0 0
    %1237 = vperm.xlu0 %1236, %v1183
    %v1238 = vpop.permute.xlu0 %1237
    %1241 = vset.pattern.permute.xlu0 0
    %1242 = vperm.xlu0 %1241, %v1184
    %v1243 = vpop.permute.xlu0 %1242
    %1246 = vset.pattern.permute.xlu0 0
    %1247 = vperm.xlu0 %1246, %v1185
    %v1248 = vpop.permute.xlu0 %1247
    %1251 = vset.pattern.permute.xlu0 0
    %1252 = vperm.xlu0 %1251, %v1186
    %v1253 = vpop.permute.xlu0 %1252
    %1256 = vset.pattern.permute.xlu0 0
    %1257 = vperm.xlu0 %1256, %v1187
    %v1258 = vpop.permute.xlu0 %1257
    %1261 = vset.pattern.permute.xlu0 0
    %1262 = vperm.xlu0 %1261, %v1188
    %v1263 = vpop.permute.xlu0 %1262
    %1266 = vset.pattern.permute.xlu0 0
    %1267 = vperm.xlu0 %1266, %v1189
    %v1268 = vpop.permute.xlu0 %1267
    %1271 = vset.pattern.permute.xlu0 0
    %1272 = vperm.xlu0 %1271, %v1190
    %v1273 = vpop.permute.xlu0 %1272
    %1276 = vset.pattern.permute.xlu0 0
    %1277 = vperm.xlu0 %1276, %v1191
    %v1278 = vpop.permute.xlu0 %1277
    %1281 = vset.pattern.permute.xlu0 0
    %1282 = vperm.xlu0 %1281, %v1192
    %v1283 = vpop.permute.xlu0 %1282
    %1286 = vset.pattern.permute.xlu0 0
    %1287 = vperm.xlu0 %1286, %v1193
    %v1288 = vpop.permute.xlu0 %1287
    %1291 = vset.pattern.permute.xlu0 0
    %1292 = vperm.xlu0 %1291, %v1194
    %v1293 = vpop.permute.xlu0 %1292
    %1296 = vset.pattern.permute.xlu0 0
    %1297 = vperm.xlu0 %1296, %v1195
    %v1298 = vpop.permute.xlu0 %1297
    %1301 = vset.pattern.permute.xlu0 0
    %1302 = vperm.xlu0 %1301, %v1196
    %v1303 = vpop.permute.xlu0 %1302
    %1306 = vset.pattern.permute.xlu0 0
    %1307 = vperm.xlu0 %1306, %v1197
    %v1308 = vpop.permute.xlu0 %1307
    %1311 = vset.pattern.permute.xlu0 0
    %1312 = vperm.xlu0 %1311, %v1198
    %v1313 = vpop.permute.xlu0 %1312
    %1316 = vset.pattern.permute.xlu0 0
    %1317 = vperm.xlu0 %1316, %v1199
    %v1318 = vpop.permute.xlu0 %1317
    %1321 = vset.pattern.permute.xlu0 0
    %1322 = vperm.xlu0 %1321, %v1200
    %v1323 = vpop.permute.xlu0 %1322
    %1326 = vset.pattern.permute.xlu0 0
    %1327 = vperm.xlu0 %1326, %v1201
    %v1328 = vpop.permute.xlu0 %1327
    %1331 = vset.pattern.permute.xlu0 0
    %1332 = vperm.xlu0 %1331, %v1202
    %v1333 = vpop.permute.xlu0 %1332
    %1336 = vset.pattern.permute.xlu0 0
    %1337 = vperm.xlu0 %1336, %v1203
    %v1338 = vpop.permute.xlu0 %1337
    %1341 = vset.pattern.permute.xlu0 0
    %1342 = vperm.xlu0 %1341, %v1204
    %v1343 = vpop.permute.xlu0 %1342
    %1346 = vset.pattern.permute.xlu0 0
    %1347 = vperm.xlu0 %1346, %v1205
    %v1348 = vpop.permute.xlu0 %1347
    %1351 = vset.pattern.permute.xlu0 0
    %1352 = vperm.xlu0 %1351, %v1206
    %v1353 = vpop.permute.xlu0 %1352
    %1356 = vset.pattern.permute.xlu0 0
    %1357 = vperm.xlu0 %1356, %v1207
    %v1358 = vpop.permute.xlu0 %1357
    %1361 = vset.pattern.permute.xlu0 0
    %1362 = vperm.xlu0 %1361, %v1208
    %v1363 = vpop.permute.xlu0 %1362
    %1366 = vset.pattern.permute.xlu0 0
    %1367 = vperm.xlu0 %1366, %v1209
    %v1368 = vpop.permute.xlu0 %1367
    %v1370 = vmul.f32 %v1146, %v1213
    %v1371 = vmul.f32 %v1147, %v1218
    %v1372 = vmul.f32 %v1148, %v1223
    %v1373 = vmul.f32 %v1149, %v1228
    %v1374 = vmul.f32 %v1150, %v1233
    %v1375 = vmul.f32 %v1151, %v1238
    %v1376 = vmul.f32 %v1152, %v1243
    %v1377 = vmul.f32 %v1153, %v1248
    %v1378 = vmul.f32 %v1154, %v1253
    %v1379 = vmul.f32 %v1155, %v1258
    %v1380 = vmul.f32 %v1156, %v1263
    %v1381 = vmul.f32 %v1157, %v1268
    %v1382 = vmul.f32 %v1158, %v1273
    %v1383 = vmul.f32 %v1159, %v1278
    %v1384 = vmul.f32 %v1160, %v1283
    %v1385 = vmul.f32 %v1161, %v1288
    %v1386 = vmul.f32 %v1162, %v1293
    %v1387 = vmul.f32 %v1163, %v1298
    %v1388 = vmul.f32 %v1164, %v1303
    %v1389 = vmul.f32 %v1165, %v1308
    %v1390 = vmul.f32 %v1166, %v1313
    %v1391 = vmul.f32 %v1167, %v1318
    %v1392 = vmul.f32 %v1168, %v1323
    %v1393 = vmul.f32 %v1169, %v1328
    %v1394 = vmul.f32 %v1170, %v1333
    %v1395 = vmul.f32 %v1171, %v1338
    %v1396 = vmul.f32 %v1172, %v1343
    %v1397 = vmul.f32 %v1173, %v1348
    %v1398 = vmul.f32 %v1174, %v1353
    %v1399 = vmul.f32 %v1175, %v1358
    %v1400 = vmul.f32 %v1176, %v1363
    %v1401 = vmul.f32 %v1177, %v1368
    %v1402 = vadd.f32 %v1370, %v1371
    %v1403 = vadd.f32 %v1402, %v1372
    %v1404 = vadd.f32 %v1403, %v1373
    %v1405 = vadd.f32 %v1404, %v1374
    %v1406 = vadd.f32 %v1405, %v1375
    %v1407 = vadd.f32 %v1406, %v1376
    %v1408 = vadd.f32 %v1407, %v1377
    %v1409 = vadd.f32 %v1408, %v1378
    %v1410 = vadd.f32 %v1409, %v1379
    %v1411 = vadd.f32 %v1410, %v1380
    %v1412 = vadd.f32 %v1411, %v1381
    %v1413 = vadd.f32 %v1412, %v1382
    %v1414 = vadd.f32 %v1413, %v1383
    %v1415 = vadd.f32 %v1414, %v1384
    %v1416 = vadd.f32 %v1415, %v1385
    %v1417 = vadd.f32 %v1416, %v1386
    %v1418 = vadd.f32 %v1417, %v1387
    %v1419 = vadd.f32 %v1418, %v1388
    %v1420 = vadd.f32 %v1419, %v1389
    %v1421 = vadd.f32 %v1420, %v1390
    %v1422 = vadd.f32 %v1421, %v1391
    %v1423 = vadd.f32 %v1422, %v1392
    %v1424 = vadd.f32 %v1423, %v1393
    %v1425 = vadd.f32 %v1424, %v1394
    %v1426 = vadd.f32 %v1425, %v1395
    %v1427 = vadd.f32 %v1426, %v1396
    %v1428 = vadd.f32 %v1427, %v1397
    %v1429 = vadd.f32 %v1428, %v1398
    %v1430 = vadd.f32 %v1429, %v1399
    %v1431 = vadd.f32 %v1430, %v1400
    %v1432 = vadd.f32 %v1431, %v1401
    %v1433 = vrot.slane %v1432, 4
    %v1434 = vadd.f32 %v1432, %v1433
    %v1435 = vrot.slane %v1434, 2
    %v1436 = vadd.f32 %v1434, %v1435
    %v1437 = vrot.slane %v1436, 1
    %v1438 = vadd.f32 %v1436, %v1437
    %v1439 = vld [vmem:[#allocation2] sm:$0x1]
    %1441 = vset.pattern.permute.xlu0 0
    %1442 = vperm.xlu0 %1441, %v1439
    %v1443 = vpop.permute.xlu0 %1442
    %v1445 = vlaneseq
    %v1446 = vshrl.u32 %v1445, 7
    %v1447 = vsub.s32 0, %v1446
    %v1448 = vrot.slane %v1443, %v1447
    %v1449 = vadd.f32 %v1438, %v1448
    %1450 = vst [vmem:[#allocation3] sm:$0x1] %v1449
    // Predicated region
    $region30: #{tpu_custom_call.1} parent=1 // pred_check
      _
    $region31: #{tpu_custom_call.1} parent=1 // pred_check_branch
      %1452 = sbr.rel (0) target = $region33
    $region32: #{tpu_custom_call.1} parent=1 // pred_region
      %s1454 = ssub.s32 16, 16
      %1455 = vsyncadd [#allocation4], %s1454
      %s1457 = sshll.u32 [#allocation3], 4
      %s1458 = int_to_ptr.vmem [resolvable:$true] %s1457
      %1460 = dma.vmem_to_hbm [thread:$0]  %s1458, 16, %s7, [#allocation4]
    $region33: #{tpu_custom_call.1} parent=1 // pred_fallthru
      _
    // Predicated region
    $region34: #{tpu_custom_call.1} parent=1 // pred_check
      _
    $region35: #{tpu_custom_call.1} parent=1 // pred_check_branch
      %1462 = sbr.rel (0) target = $region37
    $region36: #{tpu_custom_call.1} parent=1 // pred_region
      %1463 = dma.done [#allocation4], 16
    $region37: #{tpu_custom_call.1} parent=1 // pred_fallthru
      _
    %1464 = vsyncpa [#allocation4], 1

</llo_original>
